<compile_context>
chip_gen: v5e
topology: v5e:2x2
jax: 0.10.0
libtpu: 0.0.40
codegen_flags: <defaults>
</compile_context>

<pallas_src>
import functools

import jax
import jax.numpy as jnp
from jax import lax
from jax.experimental import pallas as pl
from jax.experimental.pallas import tpu as pltpu


# ----------------------------------------------------------------------------
# Kernel
# ----------------------------------------------------------------------------
def _critic_kernel(x_ref, u_ref,
                   w1x_ref, w1u_ref, b1_ref,
                   w2_ref, b2_ref,
                   w3_ref, b3_ref,
                   q_ref):
    w_dtype = w2_ref.dtype

    # Fused layer 1 (both Q branches), feature-major.  torch.cat([x, u], 1) is
    # folded into two dots; inputs stay batch-major in HBM and are contracted
    # over their minor dim (q @ k.T idiom), giving h of shape (2h, tb).
    dn = (((1,), (1,)), ((), ()))  # contract lhs dim 1 with rhs dim 1
    h = (lax.dot_general(w1x_ref[...], x_ref[...].astype(w_dtype), dn,
                         preferred_element_type=jnp.float32)
         + lax.dot_general(w1u_ref[...], u_ref[...].astype(w_dtype), dn,
                           preferred_element_type=jnp.float32)
         + b1_ref[...])                                    # (2h, tb) f32
    h = jnp.maximum(h, 0.0)

    # Fused layer 2: block-diagonal [w2 0; 0 w5].
    h = (jnp.dot(w2_ref[...], h.astype(w_dtype),
                 preferred_element_type=jnp.float32) + b2_ref[...])
    h = jnp.maximum(h, 0.0)

    # Fused layer 3: [w3 0; 0 w6] -> lane-dense (2, tb) output block.
    q_ref[...] = (jnp.dot(w3_ref[...], h.astype(w_dtype),
                          preferred_element_type=jnp.float32) + b3_ref[...])


# ----------------------------------------------------------------------------
# Wrapper
# ----------------------------------------------------------------------------
def _round_up(x, m):
    return ((x + m - 1) // m) * m


def _choose_tile(batch, block_batch):
    # Small batch: single exact block (block dims == full array dims, so no
    # (8,128) alignment requirement and no padding/tail handling needed).
    if batch <= 256:
        return batch
    # Large batch: lane-aligned tiles (output last dim must be a multiple of
    # 128 whenever it is not the full batch), capped at ~ceil(B/2) so the grid
    # has at least two steps and v7x can use both TensorCores, and capped at
    # block_batch for VMEM / pipelining.
    tile = _round_up(-(-batch // 2), 128)
    return min(tile, block_batch)


@functools.partial(jax.jit, static_argnames=("block_batch",))
def critic_forward(x, u, fused, *, block_batch=4096):
    """Pallas equivalent of Critic.forward(x, u) -> (q1, q2).

    x: (B, state_dim) f32, u: (B, action_dim) f32.
    fused: dict of branch-fused, feature-major weights (see fuse_params).
    """
    B, state_dim = x.shape
    action_dim = u.shape[1]

    tb = _choose_tile(B, block_batch)
    grid = pl.cdiv(B, tb)  # partial tail block handled by Pallas (no jnp.pad copy)

    def const_spec(arr):
        # Constant index_map -> weights stay VMEM-resident across grid steps.
        return pl.BlockSpec(arr.shape, lambda i: (0, 0))

    q = pl.pallas_call(
        _critic_kernel,
        out_shape=jax.ShapeDtypeStruct((2, B), jnp.float32),
        grid=(grid,),
        in_specs=[
            pl.BlockSpec((tb, state_dim), lambda i: (i, 0)),
            pl.BlockSpec((tb, action_dim), lambda i: (i, 0)),
            const_spec(fused["w1x"]),
            const_spec(fused["w1u"]),
            const_spec(fused["b1"]),
            const_spec(fused["w2"]),
            const_spec(fused["b2"]),
            const_spec(fused["w3"]),
            const_spec(fused["b3"]),
        ],
        out_specs=pl.BlockSpec((2, tb), lambda i: (0, i)),
        compiler_params=pltpu.CompilerParams(
            dimension_semantics=("parallel",)),
    )(x, u,
      fused["w1x"], fused["w1u"], fused["b1"],
      fused["w2"], fused["b2"],
      fused["w3"], fused["b3"])

    return q[0][:, None], q[1][:, None]


# ----------------------------------------------------------------------------
# Parameters (PyTorch nn.Linear layout: weight (out, in), bias (out,))
# ----------------------------------------------------------------------------
def init_params(key, state_dim, action_dim, h_size):
    in_dim = state_dim + action_dim
    dims = [(h_size, in_dim), (h_size, h_size), (1, h_size),   # l1, l2, l3
            (h_size, in_dim), (h_size, h_size), (1, h_size)]   # l4, l5, l6
    params = {}
    keys = jax.random.split(key, 2 * len(dims))
    for i, (dout, din) in enumerate(dims):
        bound = 1.0 / (din ** 0.5)
        params[f"w{i + 1}"] = jax.random.uniform(
            keys[2 * i], (dout, din), jnp.float32, minval=-bound, maxval=bound)
        params[f"b{i + 1}"] = jax.random.uniform(
            keys[2 * i + 1], (dout,), jnp.float32, minval=-bound, maxval=bound)
    return params


def fuse_params(p, state_dim, h_size, dtype=jnp.float32):
    """Build branch-fused, feature-major weights (done once, offline).

    dtype=jnp.bfloat16 is recommended on v5e (bf16-native MXU); biases stay
    f32 since they are added to the f32 accumulator.
    NOTE: the block-diagonal layer-2 fusion is exact but only MXU-efficient
    while 2*h_size fits one MXU tile (<=128 on v5e, <=256 on v6e/v7x); un-fuse
    into two dots if h_size grows beyond that.
    """
    h = h_size
    # Layer 1: stack both branches on rows, split columns into x / u parts.
    w1f = jnp.concatenate([p["w1"], p["w4"]], axis=0)          # (2h, in_dim)
    w1x = w1f[:, :state_dim]                                   # (2h, state_dim)
    w1u = w1f[:, state_dim:]                                   # (2h, action_dim)
    b1 = jnp.concatenate([p["b1"], p["b4"]])[:, None]          # (2h, 1)

    # Layer 2: block-diagonal [w2 0; 0 w5].
    w2 = jnp.zeros((2 * h, 2 * h), jnp.float32)
    w2 = w2.at[:h, :h].set(p["w2"]).at[h:, h:].set(p["w5"])
    b2 = jnp.concatenate([p["b2"], p["b5"]])[:, None]          # (2h, 1)

    # Layer 3: [w3 0; 0 w6] -> (2, 2h).
    w3 = jnp.zeros((2, 2 * h), jnp.float32)
    w3 = w3.at[0, :h].set(p["w3"][0]).at[1, h:].set(p["w6"][0])
    b3 = jnp.concatenate([p["b3"], p["b6"]])[:, None]          # (2, 1)

    return {"w1x": w1x.astype(dtype), "w1u": w1u.astype(dtype), "b1": b1,
            "w2": w2.astype(dtype), "b2": b2,
            "w3": w3.astype(dtype), "b3": b3}


# ----------------------------------------------------------------------------
# Pure-JAX reference (mirrors the PyTorch module)
# ----------------------------------------------------------------------------
def _reference_forward(x, u, p):
    xu = jnp.concatenate([x, u], axis=1)
    h = jnp.maximum(xu @ p["w1"].T + p["b1"], 0.0)
    h = jnp.maximum(h @ p["w2"].T + p["b2"], 0.0)
    q1 = h @ p["w3"].T + p["b3"]
    g = jnp.maximum(xu @ p["w4"].T + p["b4"], 0.0)
    g = jnp.maximum(g @ p["w5"].T + p["b5"], 0.0)
    q2 = g @ p["w6"].T + p["b6"]
    return q1, q2


if __name__ == "__main__":
    key = jax.random.PRNGKey(0)
    k_param, k_x, k_u = jax.random.split(key, 3)

    batch = 8
    state_dim = 12
    action_dim = 4
    h_size = 32

    params = init_params(k_param, state_dim, action_dim, h_size)
    fused_f32 = fuse_params(params, state_dim, h_size)

    x = jax.random.normal(k_x, (batch, state_dim), jnp.float32)
    u = jax.random.normal(k_u, (batch, action_dim), jnp.float32)

    q1, q2 = critic_forward(x, u, fused_f32)
    jax.block_until_ready((q1, q2))

    q1_ref, q2_ref = _reference_forward(x, u, params)
    assert q1.shape == (batch, 1) and q2.shape == (batch, 1)
    assert jnp.allclose(q1, q1_ref, atol=1e-4, rtol=1e-5)
    assert jnp.allclose(q2, q2_ref, atol=1e-4, rtol=1e-5)

    # Larger, non-tile-aligned batch: exercises the multi-block grid with a
    # masked partial tail block (no wrapper-side padding copy).
    k_x2, k_u2 = jax.random.split(jax.random.PRNGKey(1))
    big = 2000
    x2 = jax.random.normal(k_x2, (big, state_dim), jnp.float32)
    u2 = jax.random.normal(k_u2, (big, action_dim), jnp.float32)
    q1b, q2b = critic_forward(x2, u2, fused_f32)
    jax.block_until_ready((q1b, q2b))
    q1b_ref, q2b_ref = _reference_forward(x2, u2, params)
    assert q1b.shape == (big, 1) and q2b.shape == (big, 1)
    assert jnp.allclose(q1b, q1b_ref, atol=1e-4, rtol=1e-5)
    assert jnp.allclose(q2b, q2b_ref, atol=1e-4, rtol=1e-5)

    # bf16-weight variant (v5e-oriented); f32 accumulation retained, so only a
    # small numerics change -> loose tolerance.
    fused_bf16 = fuse_params(params, state_dim, h_size, dtype=jnp.bfloat16)
    q1c, q2c = critic_forward(x2, u2, fused_bf16)
    jax.block_until_ready((q1c, q2c))
    assert jnp.allclose(q1c, q1b_ref, atol=5e-2, rtol=5e-2)
    assert jnp.allclose(q2c, q2b_ref, atol=5e-2, rtol=5e-2)

    print("KERNEL_OK")
</pallas_src>

<mosaic_0001>
module attributes {stable_mosaic.version = 11 : i64} {
  func.func @_critic_kernel(%arg0: i32, %arg1: memref<8x12xf32, #tpu.memory_space<vmem>>, %arg2: memref<8x4xf32, #tpu.memory_space<vmem>>, %arg3: memref<64x12xf32, #tpu.memory_space<vmem>>, %arg4: memref<64x4xf32, #tpu.memory_space<vmem>>, %arg5: memref<64x1xf32, #tpu.memory_space<vmem>>, %arg6: memref<64x64xf32, #tpu.memory_space<vmem>>, %arg7: memref<64x1xf32, #tpu.memory_space<vmem>>, %arg8: memref<2x64xf32, #tpu.memory_space<vmem>>, %arg9: memref<2x1xf32, #tpu.memory_space<vmem>>, %arg10: memref<2x8xf32, #tpu.memory_space<vmem>>) attributes {dimension_semantics = [#tpu.dimension_semantics<parallel>], iteration_bounds = array<i64: 1>, scalar_prefetch = 0 : i64, scratch_operands = 0 : i64, tpu.core_type = #tpu.core_type<tc>, window_params = [{transform_indices = @transform_0, window_bounds = array<i64: 8, 12>}, {transform_indices = @transform_1, window_bounds = array<i64: 8, 4>}, {pipeline_mode = #tpu.pipeline_mode<synchronous>, transform_indices = @transform_2, window_bounds = array<i64: 64, 12>}, {pipeline_mode = #tpu.pipeline_mode<synchronous>, transform_indices = @transform_3, window_bounds = array<i64: 64, 4>}, {pipeline_mode = #tpu.pipeline_mode<synchronous>, transform_indices = @transform_4, window_bounds = array<i64: 64, 1>}, {pipeline_mode = #tpu.pipeline_mode<synchronous>, transform_indices = @transform_5, window_bounds = array<i64: 64, 64>}, {pipeline_mode = #tpu.pipeline_mode<synchronous>, transform_indices = @transform_6, window_bounds = array<i64: 64, 1>}, {pipeline_mode = #tpu.pipeline_mode<synchronous>, transform_indices = @transform_7, window_bounds = array<i64: 2, 64>}, {pipeline_mode = #tpu.pipeline_mode<synchronous>, transform_indices = @transform_8, window_bounds = array<i64: 2, 1>}, {transform_indices = @transform_9, window_bounds = array<i64: 2, 8>}]} {
    %c0 = arith.constant 0 : index
    %c0_0 = arith.constant 0 : index
    %0 = vector.load %arg3[%c0, %c0_0] : memref<64x12xf32, #tpu.memory_space<vmem>>, vector<64x12xf32>
    %c0_1 = arith.constant 0 : index
    %c0_2 = arith.constant 0 : index
    %1 = vector.load %arg1[%c0_1, %c0_2] : memref<8x12xf32, #tpu.memory_space<vmem>>, vector<8x12xf32>
    %cst = arith.constant dense<0.000000e+00> : vector<64x8xf32>
    %2 = tpu.matmul %0, %1, %cst {dimension_numbers = #tpu.dot_dimension_numbers<[1], [1], [0], [0], [0, 0, 1, 0], [], []>} : vector<64x12xf32>, vector<8x12xf32>, vector<64x8xf32> -> vector<64x8xf32>
    %c0_3 = arith.constant 0 : index
    %c0_4 = arith.constant 0 : index
    %3 = vector.load %arg4[%c0_3, %c0_4] : memref<64x4xf32, #tpu.memory_space<vmem>>, vector<64x4xf32>
    %c0_5 = arith.constant 0 : index
    %c0_6 = arith.constant 0 : index
    %4 = vector.load %arg2[%c0_5, %c0_6] : memref<8x4xf32, #tpu.memory_space<vmem>>, vector<8x4xf32>
    %cst_7 = arith.constant dense<0.000000e+00> : vector<64x8xf32>
    %5 = tpu.matmul %3, %4, %cst_7 {dimension_numbers = #tpu.dot_dimension_numbers<[1], [1], [0], [0], [0, 0, 1, 0], [], []>} : vector<64x4xf32>, vector<8x4xf32>, vector<64x8xf32> -> vector<64x8xf32>
    %6 = arith.addf %2, %5 : vector<64x8xf32>
    %c0_8 = arith.constant 0 : index
    %c0_9 = arith.constant 0 : index
    %7 = vector.load %arg5[%c0_8, %c0_9] : memref<64x1xf32, #tpu.memory_space<vmem>>, vector<64x1xf32>
    %8 = vector.broadcast %7 : vector<64x1xf32> to vector<64x8xf32>
    %9 = arith.addf %6, %8 : vector<64x8xf32>
    %cst_10 = arith.constant 0.000000e+00 : f32
    %10 = vector.broadcast %cst_10 : f32 to vector<64x8xf32>
    %11 = arith.maximumf %9, %10 : vector<64x8xf32>
    %c0_11 = arith.constant 0 : index
    %c0_12 = arith.constant 0 : index
    %12 = vector.load %arg6[%c0_11, %c0_12] : memref<64x64xf32, #tpu.memory_space<vmem>>, vector<64x64xf32>
    %cst_13 = arith.constant dense<0.000000e+00> : vector<64x8xf32>
    %13 = tpu.matmul %12, %11, %cst_13 {dimension_numbers = #tpu.dot_dimension_numbers<[1], [0], [0], [1], [0, 0, 1, 1], [], []>} : vector<64x64xf32>, vector<64x8xf32>, vector<64x8xf32> -> vector<64x8xf32>
    %c0_14 = arith.constant 0 : index
    %c0_15 = arith.constant 0 : index
    %14 = vector.load %arg7[%c0_14, %c0_15] : memref<64x1xf32, #tpu.memory_space<vmem>>, vector<64x1xf32>
    %15 = vector.broadcast %14 : vector<64x1xf32> to vector<64x8xf32>
    %16 = arith.addf %13, %15 : vector<64x8xf32>
    %cst_16 = arith.constant 0.000000e+00 : f32
    %17 = vector.broadcast %cst_16 : f32 to vector<64x8xf32>
    %18 = arith.maximumf %16, %17 : vector<64x8xf32>
    %c0_17 = arith.constant 0 : index
    %c0_18 = arith.constant 0 : index
    %19 = vector.load %arg8[%c0_17, %c0_18] : memref<2x64xf32, #tpu.memory_space<vmem>>, vector<2x64xf32>
    %cst_19 = arith.constant dense<0.000000e+00> : vector<2x8xf32>
    %20 = tpu.matmul %19, %18, %cst_19 {dimension_numbers = #tpu.dot_dimension_numbers<[1], [0], [0], [1], [0, 0, 1, 1], [], []>} : vector<2x64xf32>, vector<64x8xf32>, vector<2x8xf32> -> vector<2x8xf32>
    %c0_20 = arith.constant 0 : index
    %c0_21 = arith.constant 0 : index
    %21 = vector.load %arg9[%c0_20, %c0_21] : memref<2x1xf32, #tpu.memory_space<vmem>>, vector<2x1xf32>
    %22 = vector.broadcast %21 : vector<2x1xf32> to vector<2x8xf32>
    %23 = arith.addf %20, %22 : vector<2x8xf32>
    %c0_22 = arith.constant 0 : index
    %c0_23 = arith.constant 0 : index
    %24 = vector.load %arg10[%c0_22, %c0_23] : memref<2x8xf32, #tpu.memory_space<vmem>>, vector<2x8xf32>
    tpu.vector_store %arg10[%c0_22, %c0_23], %23 {strides = array<i32>} : memref<2x8xf32, #tpu.memory_space<vmem>>, vector<2x8xf32>,
    return
  }
  func.func @transform_0(%arg0: i32) -> (i32, i32) {
    %c0_i32 = arith.constant 0 : i32
    %c0_i32_0 = arith.constant 0 : i32
    return %arg0, %c0_i32 : i32, i32
  }
  func.func @transform_1(%arg0: i32) -> (i32, i32) {
    %c0_i32 = arith.constant 0 : i32
    %c0_i32_0 = arith.constant 0 : i32
    return %arg0, %c0_i32 : i32, i32
  }
  func.func @transform_2(%arg0: i32) -> (i32, i32) {
    %c0_i32 = arith.constant 0 : i32
    %c0_i32_0 = arith.constant 0 : i32
    %c0_i32_1 = arith.constant 0 : i32
    return %c0_i32, %c0_i32_0 : i32, i32
  }
  func.func @transform_3(%arg0: i32) -> (i32, i32) {
    %c0_i32 = arith.constant 0 : i32
    %c0_i32_0 = arith.constant 0 : i32
    %c0_i32_1 = arith.constant 0 : i32
    return %c0_i32, %c0_i32_0 : i32, i32
  }
  func.func @transform_4(%arg0: i32) -> (i32, i32) {
    %c0_i32 = arith.constant 0 : i32
    %c0_i32_0 = arith.constant 0 : i32
    %c0_i32_1 = arith.constant 0 : i32
    return %c0_i32, %c0_i32_0 : i32, i32
  }
  func.func @transform_5(%arg0: i32) -> (i32, i32) {
    %c0_i32 = arith.constant 0 : i32
    %c0_i32_0 = arith.constant 0 : i32
    %c0_i32_1 = arith.constant 0 : i32
    return %c0_i32, %c0_i32_0 : i32, i32
  }
  func.func @transform_6(%arg0: i32) -> (i32, i32) {
    %c0_i32 = arith.constant 0 : i32
    %c0_i32_0 = arith.constant 0 : i32
    %c0_i32_1 = arith.constant 0 : i32
    return %c0_i32, %c0_i32_0 : i32, i32
  }
  func.func @transform_7(%arg0: i32) -> (i32, i32) {
    %c0_i32 = arith.constant 0 : i32
    %c0_i32_0 = arith.constant 0 : i32
    %c0_i32_1 = arith.constant 0 : i32
    return %c0_i32, %c0_i32_0 : i32, i32
  }
  func.func @transform_8(%arg0: i32) -> (i32, i32) {
    %c0_i32 = arith.constant 0 : i32
    %c0_i32_0 = arith.constant 0 : i32
    %c0_i32_1 = arith.constant 0 : i32
    return %c0_i32, %c0_i32_0 : i32, i32
  }
  func.func @transform_9(%arg0: i32) -> (i32, i32) {
    %c0_i32 = arith.constant 0 : i32
    %c0_i32_0 = arith.constant 0 : i32
    return %c0_i32, %arg0 : i32, i32
  }
}

</mosaic_0001>

<llo_original>
// kernel: critic_forward.1
$region0: #{critic_forward.1}
  #allocation0 [shape = 'u32[]', space=smem, size = 0x4, offset = 0x4, fixed_abs, tag = 'smem constant byte address 0x4 - core index']
  #allocation1 [shape = 'u32[72,128]{1,0:T(1,128)}', space=vmem, size = 0x9000, scoped, tag = 'internal scratch']
  %s0 = inlined_call_operand.vmem [shape: f32[8,12], index: 0, kind: input, shape index: {}]
  %s1 = inlined_call_operand.vmem [shape: f32[8,4], index: 1, kind: input, shape index: {}]
  %s2 = inlined_call_operand.vmem [shape: f32[64,12], index: 2, kind: input, shape index: {}]
  %s3 = inlined_call_operand.vmem [shape: f32[64,4], index: 3, kind: input, shape index: {}]
  %s4 = inlined_call_operand.vmem [shape: f32[64,1], index: 4, kind: input, shape index: {}]
  %s5 = inlined_call_operand.vmem [shape: f32[64,64], index: 5, kind: input, shape index: {}]
  %s6 = inlined_call_operand.vmem [shape: f32[64,1], index: 6, kind: input, shape index: {}]
  %s7 = inlined_call_operand.vmem [shape: f32[2,64], index: 7, kind: input, shape index: {}]
  %s8 = inlined_call_operand.vmem [shape: f32[2,1], index: 8, kind: input, shape index: {}]
  %s9 = inlined_call_operand.vmem [shape: f32[2,8], index: 9, kind: output, shape index: {}]
  %s10 = sld [smem:[#allocation0]]
  $region46: #{critic_forward.1} parent=0
    _
  %s12 = ssub.s32 1, %s10
  %s13 = scalar_select 0, %s12, %s10
  // Predicated region
  $region2: #{critic_forward.1} parent=0 // pred_check
    _
  $region3: #{critic_forward.1} parent=0 // pred_check_branch
    %15 = sbr.rel (0) target = $region5
  $region4: #{critic_forward.1} parent=0 // pred_region
    _
  $region5: #{critic_forward.1} parent=0 // pred_fallthru
    _
  // Predicated region
  $region6: #{critic_forward.1} parent=0 // pred_check
    _
  $region7: #{critic_forward.1} parent=0 // pred_check_branch
    %17 = sbr.rel (0) target = $region9
  $region8: #{critic_forward.1} parent=0 // pred_region
    _
  $region9: #{critic_forward.1} parent=0 // pred_fallthru
    _
  // Predicated region
  $region10: #{critic_forward.1} parent=0 // pred_check
    _
  $region11: #{critic_forward.1} parent=0 // pred_check_branch
    %19 = sbr.rel (0) target = $region13
  $region12: #{critic_forward.1} parent=0 // pred_region
    _
  $region13: #{critic_forward.1} parent=0 // pred_fallthru
    _
  // Predicated region
  $region14: #{critic_forward.1} parent=0 // pred_check
    _
  $region15: #{critic_forward.1} parent=0 // pred_check_branch
    %21 = sbr.rel (0) target = $region17
  $region16: #{critic_forward.1} parent=0 // pred_region
    _
  $region17: #{critic_forward.1} parent=0 // pred_fallthru
    _
  // Predicated region
  $region18: #{critic_forward.1} parent=0 // pred_check
    _
  $region19: #{critic_forward.1} parent=0 // pred_check_branch
    %23 = sbr.rel (0) target = $region21
  $region20: #{critic_forward.1} parent=0 // pred_region
    _
  $region21: #{critic_forward.1} parent=0 // pred_fallthru
    _
  // Predicated region
  $region22: #{critic_forward.1} parent=0 // pred_check
    _
  $region23: #{critic_forward.1} parent=0 // pred_check_branch
    %25 = sbr.rel (0) target = $region25
  $region24: #{critic_forward.1} parent=0 // pred_region
    _
  $region25: #{critic_forward.1} parent=0 // pred_fallthru
    _
  // Predicated region
  $region26: #{critic_forward.1} parent=0 // pred_check
    _
  $region27: #{critic_forward.1} parent=0 // pred_check_branch
    %27 = sbr.rel (0) target = $region29
  $region28: #{critic_forward.1} parent=0 // pred_region
    _
  $region29: #{critic_forward.1} parent=0 // pred_fallthru
    _
  // Predicated region
  $region30: #{critic_forward.1} parent=0 // pred_check
    _
  $region31: #{critic_forward.1} parent=0 // pred_check_branch
    %29 = sbr.rel (0) target = $region33
  $region32: #{critic_forward.1} parent=0 // pred_region
    _
  $region33: #{critic_forward.1} parent=0 // pred_fallthru
    _
  // Predicated region
  $region34: #{critic_forward.1} parent=0 // pred_check
    _
  $region35: #{critic_forward.1} parent=0 // pred_check_branch
    %31 = sbr.rel (0) target = $region37
  $region36: #{critic_forward.1} parent=0 // pred_region
    _
  $region37: #{critic_forward.1} parent=0 // pred_fallthru
    _
  %v32 = vld [vmem:[%s2] sm:$0xff]
  %v33 = vld [vmem:[%s2 + $0x8] sm:$0xff]
  %v34 = vld [vmem:[%s2 + $0x10] sm:$0xff]
  %v35 = vld [vmem:[%s2 + $0x18] sm:$0xff]
  %v36 = vld [vmem:[%s2 + $0x20] sm:$0xff]
  %v37 = vld [vmem:[%s2 + $0x28] sm:$0xff]
  %v38 = vld [vmem:[%s2 + $0x30] sm:$0xff]
  %v39 = vld [vmem:[%s2 + $0x38] sm:$0xff]
  %v40 = vld [vmem:[%s0] sm:$0xff]
  %v41 = vld [vmem:[%s3] sm:$0xff]
  %v42 = vld [vmem:[%s3 + $0x8] sm:$0xff]
  %v43 = vld [vmem:[%s3 + $0x10] sm:$0xff]
  %v44 = vld [vmem:[%s3 + $0x18] sm:$0xff]
  %v45 = vld [vmem:[%s3 + $0x20] sm:$0xff]
  %v46 = vld [vmem:[%s3 + $0x28] sm:$0xff]
  %v47 = vld [vmem:[%s3 + $0x30] sm:$0xff]
  %v48 = vld [vmem:[%s3 + $0x38] sm:$0xff]
  %v49 = vld [vmem:[%s1] sm:$0xff]
  %vm50 = vcmask 31744
  %v52 = vsel %vm50, %v41, 0
  %v55 = vsel %vm50, %v42, 0
  %v58 = vsel %vm50, %v43, 0
  %v61 = vsel %vm50, %v44, 0
  %v64 = vsel %vm50, %v45, 0
  %v67 = vsel %vm50, %v46, 0
  %v70 = vsel %vm50, %v47, 0
  %v73 = vsel %vm50, %v48, 0
  %v76 = vsel %vm50, %v49, 0
  %78 = vmatpush.xpose.msra.mxu0 0.0
  %79 = vmatpush.xpose.msra.mxu0 0.0
  %80 = vmatpush.xpose.msra.mxu0 0.0
  %81 = vmatpush.xpose.msra.mxu0 0.0
  %82 = vmatpush.xpose.msra.mxu0 0.0
  %83 = vmatpush.xpose.msra.mxu0 0.0
  %84 = vmatpush.xpose.msra.mxu0 0.0
  %85 = vmatpush.xpose.msra.mxu0 0.0
  %86 = vmatpush.xpose.msra.mxu0 0.0
  %87 = vmatpush.xpose.msra.mxu0 0.0
  %88 = vmatpush.xpose.msra.mxu0 0.0
  %89 = vmatpush.xpose.msra.mxu0 0.0
  %90 = vmatpush.xpose.msra.mxu0 0.0
  %91 = vmatpush.xpose.msra.mxu0 0.0
  %92 = vmatpush.xpose.msra.mxu0 0.0
  %93 = vmatpush.xpose.msra.mxu0 %v76
  %94 = vmatmul.f32.gmra.mxu0 %v52
  %v95 = vpop.f32.mrf.mxu0
  %v96 = vadd.f32 0.0, %v95
  %97 = vmatmul.f32.gmra.mxu0 %v55
  %v98 = vpop.f32.mrf.mxu0
  %v99 = vadd.f32 0.0, %v98
  %100 = vmatmul.f32.gmra.mxu0 %v58
  %v101 = vpop.f32.mrf.mxu0
  %v102 = vadd.f32 0.0, %v101
  %103 = vmatmul.f32.gmra.mxu0 %v61
  %v104 = vpop.f32.mrf.mxu0
  %v105 = vadd.f32 0.0, %v104
  %106 = vmatmul.f32.gmra.mxu0 %v64
  %v107 = vpop.f32.mrf.mxu0
  %v108 = vadd.f32 0.0, %v107
  %109 = vmatmul.f32.gmra.mxu0 %v67
  %v110 = vpop.f32.mrf.mxu0
  %v111 = vadd.f32 0.0, %v110
  %112 = vmatmul.f32.gmra.mxu0 %v70
  %v113 = vpop.f32.mrf.mxu0
  %v114 = vadd.f32 0.0, %v113
  %115 = vmatmul.f32.gmra.mxu0 %v73
  %v116 = vpop.f32.mrf.mxu0
  %v117 = vadd.f32 0.0, %v116
  %118 = vdwg.mxu0
  %vm119 = vcmask 97280
  %v121 = vsel %vm119, %v32, 0
  %v124 = vsel %vm119, %v33, 0
  %v127 = vsel %vm119, %v34, 0
  %v130 = vsel %vm119, %v35, 0
  %v133 = vsel %vm119, %v36, 0
  %v136 = vsel %vm119, %v37, 0
  %v139 = vsel %vm119, %v38, 0
  %v142 = vsel %vm119, %v39, 0
  %v145 = vsel %vm119, %v40, 0
  %147 = vmatpush.xpose.msra.mxu0 0.0
  %148 = vmatpush.xpose.msra.mxu0 0.0
  %149 = vmatpush.xpose.msra.mxu0 0.0
  %150 = vmatpush.xpose.msra.mxu0 0.0
  %151 = vmatpush.xpose.msra.mxu0 0.0
  %152 = vmatpush.xpose.msra.mxu0 0.0
  %153 = vmatpush.xpose.msra.mxu0 0.0
  %154 = vmatpush.xpose.msra.mxu0 0.0
  %155 = vmatpush.xpose.msra.mxu0 0.0
  %156 = vmatpush.xpose.msra.mxu0 0.0
  %157 = vmatpush.xpose.msra.mxu0 0.0
  %158 = vmatpush.xpose.msra.mxu0 0.0
  %159 = vmatpush.xpose.msra.mxu0 0.0
  %160 = vmatpush.xpose.msra.mxu0 0.0
  %161 = vmatpush.xpose.msra.mxu0 0.0
  %162 = vmatpush.xpose.msra.mxu0 %v145
  %163 = vmatmul.f32.gmra.mxu0 %v121
  %v164 = vpop.f32.mrf.mxu0
  %v165 = vadd.f32 %v96, %v164
  %166 = vmatmul.f32.gmra.mxu0 %v124
  %v167 = vpop.f32.mrf.mxu0
  %v168 = vadd.f32 %v99, %v167
  %169 = vmatmul.f32.gmra.mxu0 %v127
  %v170 = vpop.f32.mrf.mxu0
  %v171 = vadd.f32 %v102, %v170
  %172 = vmatmul.f32.gmra.mxu0 %v130
  %v173 = vpop.f32.mrf.mxu0
  %v174 = vadd.f32 %v105, %v173
  %175 = vmatmul.f32.gmra.mxu0 %v133
  %v176 = vpop.f32.mrf.mxu0
  %v177 = vadd.f32 %v108, %v176
  %178 = vmatmul.f32.gmra.mxu0 %v136
  %v179 = vpop.f32.mrf.mxu0
  %v180 = vadd.f32 %v111, %v179
  %181 = vmatmul.f32.gmra.mxu0 %v139
  %v182 = vpop.f32.mrf.mxu0
  %v183 = vadd.f32 %v114, %v182
  %184 = vmatmul.f32.gmra.mxu0 %v142
  %v185 = vpop.f32.mrf.mxu0
  %v186 = vadd.f32 %v117, %v185
  %187 = vdwg.mxu0
  %v188 = vld [vmem:[%s4] sm:$0xff]
  %v189 = vld [vmem:[%s4 + $0x8] sm:$0xff]
  %v190 = vld [vmem:[%s4 + $0x10] sm:$0xff]
  %v191 = vld [vmem:[%s4 + $0x18] sm:$0xff]
  %v192 = vld [vmem:[%s4 + $0x20] sm:$0xff]
  %v193 = vld [vmem:[%s4 + $0x28] sm:$0xff]
  %v194 = vld [vmem:[%s4 + $0x30] sm:$0xff]
  %v195 = vld [vmem:[%s4 + $0x38] sm:$0xff]
  %197 = vset.pattern.permute.xlu0 0
  %198 = vperm.xlu0 %197, %v188
  %v199 = vpop.permute.xlu0 %198
  %202 = vset.pattern.permute.xlu0 0
  %203 = vperm.xlu0 %202, %v189
  %v204 = vpop.permute.xlu0 %203
  %207 = vset.pattern.permute.xlu0 0
  %208 = vperm.xlu0 %207, %v190
  %v209 = vpop.permute.xlu0 %208
  %212 = vset.pattern.permute.xlu0 0
  %213 = vperm.xlu0 %212, %v191
  %v214 = vpop.permute.xlu0 %213
  %217 = vset.pattern.permute.xlu0 0
  %218 = vperm.xlu0 %217, %v192
  %v219 = vpop.permute.xlu0 %218
  %222 = vset.pattern.permute.xlu0 0
  %223 = vperm.xlu0 %222, %v193
  %v224 = vpop.permute.xlu0 %223
  %227 = vset.pattern.permute.xlu0 0
  %228 = vperm.xlu0 %227, %v194
  %v229 = vpop.permute.xlu0 %228
  %232 = vset.pattern.permute.xlu0 0
  %233 = vperm.xlu0 %232, %v195
  %v234 = vpop.permute.xlu0 %233
  %v236 = vadd.f32 %v165, %v199
  %v237 = vadd.f32 %v168, %v204
  %v238 = vadd.f32 %v171, %v209
  %v239 = vadd.f32 %v174, %v214
  %v240 = vadd.f32 %v177, %v219
  %v241 = vadd.f32 %v180, %v224
  %v242 = vadd.f32 %v183, %v229
  %v243 = vadd.f32 %v186, %v234
  %v244 = vmax.f32 %v236, 0.0
  %v245 = vmax.f32 %v237, 0.0
  %v246 = vmax.f32 %v238, 0.0
  %v247 = vmax.f32 %v239, 0.0
  %v248 = vmax.f32 %v240, 0.0
  %v249 = vmax.f32 %v241, 0.0
  %v250 = vmax.f32 %v242, 0.0
  %v251 = vmax.f32 %v243, 0.0
  %v252 = vld [vmem:[%s5] sm:$0xff]
  %v253 = vld [vmem:[%s5 + $0x8] sm:$0xff]
  %v254 = vld [vmem:[%s5 + $0x10] sm:$0xff]
  %v255 = vld [vmem:[%s5 + $0x18] sm:$0xff]
  %v256 = vld [vmem:[%s5 + $0x20] sm:$0xff]
  %v257 = vld [vmem:[%s5 + $0x28] sm:$0xff]
  %v258 = vld [vmem:[%s5 + $0x30] sm:$0xff]
  %v259 = vld [vmem:[%s5 + $0x38] sm:$0xff]
  %v260 = vld [vmem:[%s6] sm:$0xff]
  %v261 = vld [vmem:[%s6 + $0x8] sm:$0xff]
  %v262 = vld [vmem:[%s6 + $0x10] sm:$0xff]
  %v263 = vld [vmem:[%s6 + $0x18] sm:$0xff]
  %v264 = vld [vmem:[%s6 + $0x20] sm:$0xff]
  %v265 = vld [vmem:[%s6 + $0x28] sm:$0xff]
  %v266 = vld [vmem:[%s6 + $0x30] sm:$0xff]
  %v267 = vld [vmem:[%s6 + $0x38] sm:$0xff]
  %269 = vset.pattern.permute.xlu0 0
  %270 = vperm.xlu0 %269, %v260
  %v271 = vpop.permute.xlu0 %270
  %274 = vset.pattern.permute.xlu0 0
  %275 = vperm.xlu0 %274, %v261
  %v276 = vpop.permute.xlu0 %275
  %279 = vset.pattern.permute.xlu0 0
  %280 = vperm.xlu0 %279, %v262
  %v281 = vpop.permute.xlu0 %280
  %284 = vset.pattern.permute.xlu0 0
  %285 = vperm.xlu0 %284, %v263
  %v286 = vpop.permute.xlu0 %285
  %289 = vset.pattern.permute.xlu0 0
  %290 = vperm.xlu0 %289, %v264
  %v291 = vpop.permute.xlu0 %290
  %294 = vset.pattern.permute.xlu0 0
  %295 = vperm.xlu0 %294, %v265
  %v296 = vpop.permute.xlu0 %295
  %299 = vset.pattern.permute.xlu0 0
  %300 = vperm.xlu0 %299, %v266
  %v301 = vpop.permute.xlu0 %300
  %304 = vset.pattern.permute.xlu0 0
  %305 = vperm.xlu0 %304, %v267
  %v306 = vpop.permute.xlu0 %305
  %vm308 = vcmask 523264
  %v310 = vsel %vm308, %v252, 0
  %v313 = vsel %vm308, %v253, 0
  %v316 = vsel %vm308, %v254, 0
  %v319 = vsel %vm308, %v255, 0
  %v322 = vsel %vm308, %v256, 0
  %v325 = vsel %vm308, %v257, 0
  %v328 = vsel %vm308, %v258, 0
  %v331 = vsel %vm308, %v259, 0
  %333 = vmatpush.msra.mxu0 0.0
  %334 = vmatpush.msra.mxu0 0.0
  %335 = vmatpush.msra.mxu0 0.0
  %336 = vmatpush.msra.mxu0 0.0
  %337 = vmatpush.msra.mxu0 0.0
  %338 = vmatpush.msra.mxu0 0.0
  %339 = vmatpush.msra.mxu0 0.0
  %340 = vmatpush.msra.mxu0 0.0
  %341 = vmatpush.msra.mxu0 %v251
  %342 = vmatpush.msra.mxu0 %v250
  %343 = vmatpush.msra.mxu0 %v249
  %344 = vmatpush.msra.mxu0 %v248
  %345 = vmatpush.msra.mxu0 %v247
  %346 = vmatpush.msra.mxu0 %v246
  %347 = vmatpush.msra.mxu0 %v245
  %348 = vmatpush.msra.mxu0 %v244
  %349 = vmatmul.f32.gmra.mxu0 %v310
  %v350 = vpop.f32.mrf.mxu0
  %v351 = vadd.f32 %v271, %v350
  %352 = vmatmul.f32.gmra.mxu0 %v313
  %v353 = vpop.f32.mrf.mxu0
  %v354 = vadd.f32 %v276, %v353
  %355 = vmatmul.f32.gmra.mxu0 %v316
  %v356 = vpop.f32.mrf.mxu0
  %v357 = vadd.f32 %v281, %v356
  %358 = vmatmul.f32.gmra.mxu0 %v319
  %v359 = vpop.f32.mrf.mxu0
  %v360 = vadd.f32 %v286, %v359
  %361 = vmatmul.f32.gmra.mxu0 %v322
  %v362 = vpop.f32.mrf.mxu0
  %v363 = vadd.f32 %v291, %v362
  %364 = vmatmul.f32.gmra.mxu0 %v325
  %v365 = vpop.f32.mrf.mxu0
  %v366 = vadd.f32 %v296, %v365
  %367 = vmatmul.f32.gmra.mxu0 %v328
  %v368 = vpop.f32.mrf.mxu0
  %v369 = vadd.f32 %v301, %v368
  %370 = vmatmul.f32.gmra.mxu0 %v331
  %v371 = vpop.f32.mrf.mxu0
  %v372 = vadd.f32 %v306, %v371
  %373 = vdwg.mxu0
  %v374 = vmax.f32 %v351, 0.0
  %v375 = vmax.f32 %v354, 0.0
  %v376 = vmax.f32 %v357, 0.0
  %v377 = vmax.f32 %v360, 0.0
  %v378 = vmax.f32 %v363, 0.0
  %v379 = vmax.f32 %v366, 0.0
  %v380 = vmax.f32 %v369, 0.0
  %v381 = vmax.f32 %v372, 0.0
  %v382 = vld [vmem:[%s7] sm:$0x3]
  %v383 = vld [vmem:[%s8] sm:$0x3]
  %385 = vset.pattern.permute.xlu0 0
  %386 = vperm.xlu0 %385, %v383
  %v387 = vpop.permute.xlu0 %386
  %v390 = vsel %vm308, %v382, 0
  %392 = vmatpush.msra.mxu0 0.0
  %393 = vmatpush.msra.mxu0 0.0
  %394 = vmatpush.msra.mxu0 0.0
  %395 = vmatpush.msra.mxu0 0.0
  %396 = vmatpush.msra.mxu0 0.0
  %397 = vmatpush.msra.mxu0 0.0
  %398 = vmatpush.msra.mxu0 0.0
  %399 = vmatpush.msra.mxu0 0.0
  %400 = vmatpush.msra.mxu0 %v381
  %401 = vmatpush.msra.mxu0 %v380
  %402 = vmatpush.msra.mxu0 %v379
  %403 = vmatpush.msra.mxu0 %v378
  %404 = vmatpush.msra.mxu0 %v377
  %405 = vmatpush.msra.mxu0 %v376
  %406 = vmatpush.msra.mxu0 %v375
  %407 = vmatpush.msra.mxu0 %v374
  %408 = vmatmul.f32.gmra.mxu0 %v390
  %v409 = vpop.f32.mrf.mxu0
  %v410 = vadd.f32 %v387, %v409
  %411 = vdwg.mxu0
  %vm412 = vcmask 58368
  %413 = vst.msk [vmem:[%s9] sm:$0x3] %vm412, %v410
  // Predicated region
  $region38: #{critic_forward.1} parent=0 // pred_check
    _
  $region39: #{critic_forward.1} parent=0 // pred_check_branch
    %415 = sbr.rel (0) target = $region41
  $region40: #{critic_forward.1} parent=0 // pred_region
    _
  $region41: #{critic_forward.1} parent=0 // pred_fallthru
    _
  // Predicated region
  $region42: #{critic_forward.1} parent=0 // pred_check
    _
  $region43: #{critic_forward.1} parent=0 // pred_check_branch
    %417 = sbr.rel (0) target = $region45
  $region44: #{critic_forward.1} parent=0 // pred_region
    _
  $region45: #{critic_forward.1} parent=0 // pred_fallthru
    _

</llo_original>
